<compile_context>
chip_gen: v7x
topology: tpu7x:2x2x1
jax: 0.10.0
libtpu: 0.0.40
codegen_flags: <defaults>
</compile_context>

<pallas_src>
import math

import jax
import jax.numpy as jnp
from jax.experimental import pallas as pl
from jax.experimental.pallas import tpu as pltpu


_MIN_PALLAS_BYTES = 512 * 1024          # below this, XLA's fused add wins
_TARGET_BLOCK_BYTES = 4 * 1024 * 1024   # ~4 MiB tiles; 6 live buffers ~24 MiB
_VMEM_LIMIT_BYTES = 32 * 1024 * 1024    # explicit so v5e (16 MiB default) compiles
_LANE_CANDIDATES = (4096, 2048, 1024, 512, 256, 128)


def _add_kernel(x0_ref, x1_ref, o_ref):
    o_ref[...] = x0_ref[...] + x1_ref[...]


def _sublane_pack(dtype):
    # Sublane packing granularity: 8 for 4-byte, 16 for 2-byte, 32 for 1-byte.
    itemsize = jnp.dtype(dtype).itemsize
    return max(8, 32 // itemsize)


def _round_up(x, m):
    return ((x + m - 1) // m) * m


def _choose_lanes(n):
    """Largest preferred lane width (multiple of 128) dividing n, preferring
    one that leaves at least 8 rows so vregs are fully populated."""
    best = None
    for lanes in _LANE_CANDIDATES:
        if n % lanes == 0:
            if best is None:
                best = lanes
            if n // lanes >= 8:
                return lanes
    return best  # None if n is not a multiple of 128


def add_layer(x0, x1, *, donate_x0=False, min_pallas_bytes=_MIN_PALLAS_BYTES):
    """Elementwise add (AddLayer.forward)."""
    x0 = jnp.asarray(x0)
    x1 = jnp.asarray(x1)

    # torch.add also supports broadcasting / dtype promotion; let XLA handle
    # those (and scalars) directly with identical semantics.
    if x0.shape != x1.shape or x0.dtype != x1.dtype or x0.ndim == 0:
        return x0 + x1

    orig_shape = x0.shape
    dtype = x0.dtype
    itemsize = jnp.dtype(dtype).itemsize
    n = math.prod(orig_shape)
    nbytes = n * itemsize

    # Tiny / empty inputs: fixed pallas_call launch + DMA-setup cost dominates.
    if n == 0 or nbytes < min_pallas_bytes:
        return x0 + x1

    # Lane-dense 2-D view.  Prefer reusing an already lane-aligned trailing dim
    # (pure leading-dim collapse, no relayout); otherwise pick a divisor of n.
    last = orig_shape[-1]
    if last % 128 == 0 and 128 <= last <= 8192:
        lanes = last
    else:
        lanes = _choose_lanes(n)

    # Ragged sizes (n not a multiple of 128): padding + slicing would roughly
    # double HBM traffic for a bandwidth-bound add, and XLA's fused add is
    # already at the roofline -- so just let XLA do it.
    if lanes is None:
        return x0 + x1

    rows = n // lanes
    x0_2d = x0.reshape(rows, lanes)
    x1_2d = x1.reshape(rows, lanes)

    # ~4 MiB blocks: 2 in + 1 out, double-buffered => ~24 MiB live VMEM,
    # under the explicit 32 MiB limit on every generation (incl. v7x).
    sub = _sublane_pack(dtype)
    tile_rows = _TARGET_BLOCK_BYTES // (lanes * itemsize)
    tile_rows = max(sub, (tile_rows // sub) * sub)
    if tile_rows >= rows:
        if rows > sub:
            # Keep >= 2 grid steps so the "parallel" axis can shard across both
            # v7x TensorCores (and the DMA pipeline actually overlaps).
            tile_rows = _round_up(pl.cdiv(rows, 2), sub)
        else:
            tile_rows = rows  # single full-extent block (tiny forced inputs)

    grid = (pl.cdiv(rows, tile_rows),)

    out_2d = pl.pallas_call(
        _add_kernel,
        out_shape=jax.ShapeDtypeStruct((rows, lanes), dtype),
        grid=grid,
        in_specs=[
            pl.BlockSpec((tile_rows, lanes), lambda i: (i, 0)),
            pl.BlockSpec((tile_rows, lanes), lambda i: (i, 0)),
        ],
        out_specs=pl.BlockSpec((tile_rows, lanes), lambda i: (i, 0)),
        compiler_params=pltpu.CompilerParams(
            dimension_semantics=("parallel",),
            vmem_limit_bytes=_VMEM_LIMIT_BYTES,
        ),
        cost_estimate=pl.CostEstimate(
            flops=n, transcendentals=0, bytes_accessed=3 * n * itemsize
        ),
        # Aliasing only helps if the caller actually donates x0 (jit
        # donate_argnums); otherwise XLA inserts a defensive copy.
        input_output_aliases=({0: 0} if donate_x0 else {}),
    )(x0_2d, x1_2d)

    return out_2d.reshape(orig_shape)


if __name__ == "__main__":
    key = jax.random.PRNGKey(0)
    k0, k1, k2, k3 = jax.random.split(key, 4)

    # Small NCHW inputs consistent with the module's usage.
    B, C, H, W = 2, 4, 16, 16
    x0 = jax.random.normal(k0, (B, C, H, W), dtype=jnp.float32)
    x1 = jax.random.normal(k1, (B, C, H, W), dtype=jnp.float32)
    ref = x0 + x1

    # Force the Pallas path on the tiny demo tensor (the default heuristic
    # would send something this small to XLA's fused add).
    out = jax.block_until_ready(add_layer(x0, x1, min_pallas_bytes=0))
    assert out.shape == ref.shape and out.dtype == ref.dtype
    assert jnp.allclose(out, ref, atol=1e-6, rtol=1e-6)

    # Default heuristics (small-input XLA fallback) must match too.
    out_fb = jax.block_until_ready(add_layer(x0, x1))
    assert jnp.allclose(out_fb, ref, atol=1e-6, rtol=1e-6)

    # A slightly larger, lane-aligned case that takes the multi-step kernel
    # path (>= 2 "parallel" grid steps, lanes reused from the trailing dim).
    y0 = jax.random.normal(k2, (2, 8, 128, 128), dtype=jnp.float32)
    y1 = jax.random.normal(k3, (2, 8, 128, 128), dtype=jnp.float32)
    out_big = jax.block_until_ready(add_layer(y0, y1))
    assert jnp.allclose(out_big, y0 + y1, atol=1e-6, rtol=1e-6)

    print("KERNEL_OK")
</pallas_src>

<mosaic_0001>
module attributes {stable_mosaic.version = 11 : i64} {
  func.func @_add_kernel(%arg0: i32, %arg1: memref<8x256xf32, #tpu.memory_space<vmem>>, %arg2: memref<8x256xf32, #tpu.memory_space<vmem>>, %arg3: memref<8x256xf32, #tpu.memory_space<vmem>>) attributes {dimension_semantics = [#tpu.dimension_semantics<parallel>], iteration_bounds = array<i64: 1>, scalar_prefetch = 0 : i64, scratch_operands = 0 : i64, tpu.core_type = #tpu.core_type<tc>, window_params = [{transform_indices = @transform_0, window_bounds = array<i64: 8, 256>}, {transform_indices = @transform_1, window_bounds = array<i64: 8, 256>}, {transform_indices = @transform_2, window_bounds = array<i64: 8, 256>}]} {
    %c0 = arith.constant 0 : index
    %c0_0 = arith.constant 0 : index
    %0 = vector.load %arg1[%c0, %c0_0] : memref<8x256xf32, #tpu.memory_space<vmem>>, vector<8x256xf32>
    %c0_1 = arith.constant 0 : index
    %c0_2 = arith.constant 0 : index
    %1 = vector.load %arg2[%c0_1, %c0_2] : memref<8x256xf32, #tpu.memory_space<vmem>>, vector<8x256xf32>
    %2 = arith.addf %0, %1 : vector<8x256xf32>
    %c0_3 = arith.constant 0 : index
    %c0_4 = arith.constant 0 : index
    %3 = vector.load %arg3[%c0_3, %c0_4] : memref<8x256xf32, #tpu.memory_space<vmem>>, vector<8x256xf32>
    tpu.vector_store %arg3[%c0_3, %c0_4], %2 {strides = array<i32>} : memref<8x256xf32, #tpu.memory_space<vmem>>, vector<8x256xf32>,
    return
  }
  func.func @transform_0(%arg0: i32) -> (i32, i32) {
    %c0_i32 = arith.constant 0 : i32
    %c0_i32_0 = arith.constant 0 : i32
    return %arg0, %c0_i32 : i32, i32
  }
  func.func @transform_1(%arg0: i32) -> (i32, i32) {
    %c0_i32 = arith.constant 0 : i32
    %c0_i32_0 = arith.constant 0 : i32
    return %arg0, %c0_i32 : i32, i32
  }
  func.func @transform_2(%arg0: i32) -> (i32, i32) {
    %c0_i32 = arith.constant 0 : i32
    %c0_i32_0 = arith.constant 0 : i32
    return %arg0, %c0_i32 : i32, i32
  }
}

</mosaic_0001>

<llo_original>
// kernel: tpu_custom_call.1
$region0: #{tpu_custom_call.1}
  #allocation0 [shape = 'u32[]', space=smem, size = 0x4, offset = 0x4, fixed_abs, tag = 'smem constant byte address 0x4 - core index']
  #allocation1 [shape = 'u32[144,128]{1,0:T(1,128)}', space=vmem, size = 0x12000, scoped, tag = 'internal scratch']
  %s0 = inlined_call_operand.hbm [shape: f32[8,256], index: 0, kind: input, shape index: {}]
  %s1 = inlined_call_operand.hbm [shape: f32[8,256], index: 1, kind: input, shape index: {}]
  %s2 = inlined_call_operand.hbm [shape: f32[8,256], index: 2, kind: output, shape index: {}]
  %s3 = sld [smem:[#allocation0]]
  $region26: #{tpu_custom_call.1} parent=0
    _
  %s5 = ssub.s32 1, %s3
  %s6 = scalar_select 0, %s5, %s3
  $region1: #{tpu_custom_call.1} parent=0
    #allocation2 [shape = 'u8[8192]{0}', space=vmem, size = 0x2000, scoped, tag = 'input window, operand 0, single buffered']
    #allocation3 [shape = 's32[1]{0}', space=sflag, size = 0x4, scoped, tag = 'scoped memory for tpu_custom_call.1']
    #allocation4 [shape = 's32[1]{0}', space=sflag, size = 0x4, scoped, tag = 'scoped memory for tpu_custom_call.1']
    #allocation5 [shape = 'u8[8192]{0}', space=vmem, size = 0x2000, scoped, tag = 'input window, operand 1, single buffered']
    #allocation6 [shape = 's32[1]{0}', space=sflag, size = 0x4, scoped, tag = 'scoped memory for tpu_custom_call.1']
    #allocation7 [shape = 'u8[8192]{0}', space=vmem, size = 0x2000, scoped, tag = 'output window, operand 0, single buffered']
    %7 = vsyncpa [#allocation3], 0
    %8 = vsyncpa [#allocation6], 0
    %9 = vsyncpa [#allocation4], 0
    // Predicated region
    $region2: #{tpu_custom_call.1} parent=1 // pred_check
      _
    $region3: #{tpu_custom_call.1} parent=1 // pred_check_branch
      %11 = sbr.rel (0) target = $region5
    $region4: #{tpu_custom_call.1} parent=1 // pred_region
      %s13 = ssub.s32 256, 256
      %14 = vsyncadd [#allocation3], %s13
      %s16 = sshll.u32 [#allocation2], 4
      %s17 = int_to_ptr.vmem [resolvable:$true] %s16
      %19 = dma.hbm_to_vmem [thread:$0]  %s0, 256, %s17, [#allocation3]
    $region5: #{tpu_custom_call.1} parent=1 // pred_fallthru
      _
    // Predicated region
    $region6: #{tpu_custom_call.1} parent=1 // pred_check
      _
    $region7: #{tpu_custom_call.1} parent=1 // pred_check_branch
      %21 = sbr.rel (0) target = $region9
    $region8: #{tpu_custom_call.1} parent=1 // pred_region
      %s23 = ssub.s32 256, 256
      %24 = vsyncadd [#allocation6], %s23
      %s26 = sshll.u32 [#allocation5], 4
      %s27 = int_to_ptr.vmem [resolvable:$true] %s26
      %29 = dma.hbm_to_vmem [thread:$0]  %s1, 256, %s27, [#allocation6]
    $region9: #{tpu_custom_call.1} parent=1 // pred_fallthru
      _
    // Predicated region
    $region10: #{tpu_custom_call.1} parent=1 // pred_check
      _
    $region11: #{tpu_custom_call.1} parent=1 // pred_check_branch
      %31 = sbr.rel (0) target = $region13
    $region12: #{tpu_custom_call.1} parent=1 // pred_region
      %32 = dma.done [#allocation3], 256
    $region13: #{tpu_custom_call.1} parent=1 // pred_fallthru
      _
    // Predicated region
    $region14: #{tpu_custom_call.1} parent=1 // pred_check
      _
    $region15: #{tpu_custom_call.1} parent=1 // pred_check_branch
      %34 = sbr.rel (0) target = $region17
    $region16: #{tpu_custom_call.1} parent=1 // pred_region
      %35 = dma.done [#allocation6], 256
    $region17: #{tpu_custom_call.1} parent=1 // pred_fallthru
      _
    %v36 = vld [vmem:[#allocation2] sm:$0xff]
    %v37 = vld [vmem:[#allocation2 + $0x8] sm:$0xff]
    %v38 = vld [vmem:[#allocation5] sm:$0xff]
    %v39 = vld [vmem:[#allocation5 + $0x8] sm:$0xff]
    %v40 = vadd.f32 %v36, %v38
    %v41 = vadd.f32 %v37, %v39
    %42 = vst [vmem:[#allocation7] sm:$0xff] %v40
    %43 = vst [vmem:[#allocation7 + $0x8] sm:$0xff] %v41
    // Predicated region
    $region18: #{tpu_custom_call.1} parent=1 // pred_check
      _
    $region19: #{tpu_custom_call.1} parent=1 // pred_check_branch
      %45 = sbr.rel (0) target = $region21
    $region20: #{tpu_custom_call.1} parent=1 // pred_region
      %s47 = ssub.s32 256, 256
      %48 = vsyncadd [#allocation4], %s47
      %s50 = sshll.u32 [#allocation7], 4
      %s51 = int_to_ptr.vmem [resolvable:$true] %s50
      %53 = dma.vmem_to_hbm [thread:$0]  %s51, 256, %s2, [#allocation4]
    $region21: #{tpu_custom_call.1} parent=1 // pred_fallthru
      _
    // Predicated region
    $region22: #{tpu_custom_call.1} parent=1 // pred_check
      _
    $region23: #{tpu_custom_call.1} parent=1 // pred_check_branch
      %55 = sbr.rel (0) target = $region25
    $region24: #{tpu_custom_call.1} parent=1 // pred_region
      %56 = dma.done [#allocation4], 256
    $region25: #{tpu_custom_call.1} parent=1 // pred_fallthru
      _
    %57 = vsyncpa [#allocation3], 1
    %58 = vsyncpa [#allocation6], 1
    %59 = vsyncpa [#allocation4], 1

</llo_original>
